<compile_context>
chip_gen: v5e
topology: v5e:2x2
jax: 0.10.0
libtpu: 0.0.40
codegen_flags: <defaults>
</compile_context>

<pallas_src>
import math
import functools

import jax
import jax.numpy as jnp
from jax import lax
from jax.experimental import pallas as pl
from jax.experimental.pallas import tpu as pltpu


# ----------------------------------------------------------------------------
# Tiling / VMEM planning helpers
# ----------------------------------------------------------------------------

def _round_up(x, m):
    return ((x + m - 1) // m) * m


def _plan_dim(dim, target, align):
    """Return (tile, padded_dim).

    Either the full dim (always a legal Mosaic block) or an `align`-multiple tile
    that exactly divides the zero-padded dim — never an awkward divisor."""
    if dim <= target:
        return dim, dim
    tile = max(align, (target // align) * align)
    return tile, _round_up(dim, tile)


@functools.lru_cache(maxsize=None)
def _vmem_limit():
    """Scoped-VMEM budget: ~3/4 of physical VMEM, capped at 96 MiB.
    -> ~96 MiB on v5e/v6e (128 MiB physical), ~48 MiB on v7x (64 MiB per TC)."""
    cap = 128 * 1024 * 1024
    try:
        cap = int(getattr(pltpu.get_tpu_info(), "vmem_capacity_bytes", cap))
    except Exception:
        cap = 64 * 1024 * 1024
    return min(cap * 3 // 4, 96 * 1024 * 1024)


# ----------------------------------------------------------------------------
# Tiled (stacked) linear kernel:  out[p] = x @ w[p] + b[p]
# ----------------------------------------------------------------------------

def _stacked_linear_kernel(x_ref, w_ref, b_ref, o_ref, acc_ref, *, single_k):
    # x: (tm, tk)  w: (1, tk, tn)  b: (1, 1, tn)  o: (1, tm, tn)  acc: (tm, tn) f32
    if single_k:
        # K axis collapsed: no accumulator round-trip, no init/finalize pl.when.
        o_ref[0] = (jnp.dot(x_ref[...], w_ref[0], preferred_element_type=jnp.float32)
                    + b_ref[0].astype(jnp.float32)).astype(o_ref.dtype)
        return

    k_id = pl.program_id(3)

    @pl.when(k_id == 0)
    def _():
        acc_ref[...] = jnp.zeros_like(acc_ref)

    acc_ref[...] += jnp.dot(x_ref[...], w_ref[0],
                            preferred_element_type=jnp.float32)

    @pl.when(k_id == pl.num_programs(3) - 1)
    def _():
        o_ref[0] = (acc_ref[...] + b_ref[0].astype(jnp.float32)).astype(o_ref.dtype)


def pallas_stacked_linear(x2d, w_stack, b_stack, *, tm=512, tn=512, tk=2048,
                          out_dtype=None):
    """x2d: (M, d_in); w_stack: (P, d_in, d_out) pre-transposed; b_stack: (P, d_out) f32.

    Returns (P, M, d_out).  P>1 fuses several projections of the same input into one
    pallas_call.  Grid order (M, P, N, K) keeps the x tile's block index constant across
    consecutive P/N steps (no re-DMA of the activation) when the K axis is collapsed."""
    M, d_in = x2d.shape
    P, d_in2, d_out = w_stack.shape
    assert d_in == d_in2
    out_dtype = x2d.dtype if out_dtype is None else out_dtype

    tm_, Mp = _plan_dim(M, tm, 8)
    tk_, Kp = _plan_dim(d_in, tk, 128)
    tn_, Np = _plan_dim(d_out, tn, 128)

    if (Mp, Kp) != (M, d_in):
        x2d = jnp.pad(x2d, ((0, Mp - M), (0, Kp - d_in)))
    if (Kp, Np) != (d_in, d_out):
        w_stack = jnp.pad(w_stack, ((0, 0), (0, Kp - d_in), (0, Np - d_out)))
    if Np != d_out:
        b_stack = jnp.pad(b_stack, ((0, 0), (0, Np - d_out)))
    b3 = b_stack.reshape(P, 1, Np)

    grid = (Mp // tm_, P, Np // tn_, Kp // tk_)
    kern = functools.partial(_stacked_linear_kernel, single_k=(Kp == tk_))

    out = pl.pallas_call(
        kern,
        out_shape=jax.ShapeDtypeStruct((P, Mp, Np), out_dtype),
        grid_spec=pltpu.PrefetchScalarGridSpec(
            num_scalar_prefetch=0,
            grid=grid,
            in_specs=[
                pl.BlockSpec((tm_, tk_), lambda i, p, j, k: (i, k)),
                pl.BlockSpec((1, tk_, tn_), lambda i, p, j, k: (p, k, j)),
                pl.BlockSpec((1, 1, tn_), lambda i, p, j, k: (p, 0, j)),
            ],
            out_specs=pl.BlockSpec((1, tm_, tn_), lambda i, p, j, k: (p, i, j)),
            scratch_shapes=[pltpu.VMEM((tm_, tn_), jnp.float32)],
        ),
        compiler_params=pltpu.CompilerParams(
            dimension_semantics=("parallel", "parallel", "parallel", "arbitrary"),
            vmem_limit_bytes=_vmem_limit()),
    )(x2d, w_stack, b3)

    if (Mp, Np) != (M, d_out):
        out = out[:, :M, :d_out]
    return out


# ----------------------------------------------------------------------------
# Flash-attention kernel: heads packed along the lane axis (lane-dense blocks)
# ----------------------------------------------------------------------------

def _flash_attn_kernel(q_ref, k_ref, v_ref, o_ref, m_ref, l_ref, acc_ref,
                       *, num_heads, d_k, kv_len, block_k, need_k_mask):
    ki = pl.program_id(2)

    @pl.when(ki == 0)
    def _():
        m_ref[...] = jnp.full_like(m_ref, -jnp.inf)
        l_ref[...] = jnp.zeros_like(l_ref)
        acc_ref[...] = jnp.zeros_like(acc_ref)

    q = q_ref[0]           # (tq, d_model)  1/sqrt(d_k) is pre-folded into Wq
    k = k_ref[0]           # (tk, d_model)
    v = v_ref[0]           # (tk, d_model)
    tq, tk = q.shape[0], k.shape[0]

    if need_k_mask:        # only traced when Lk had to be zero-padded
        col = ki * block_k + lax.broadcasted_iota(jnp.int32, (tq, tk), 1)
        kmask = col < kv_len

    for h in range(num_heads):            # static unroll over heads
        sl = slice(h * d_k, (h + 1) * d_k)
        # QK^T for this head, contracting d_k directly (no K transpose), f32 acc.
        s = lax.dot_general(q[:, sl], k[:, sl], (((1,), (1,)), ((), ())),
                            preferred_element_type=jnp.float32)      # (tq, tk)
        if need_k_mask:
            s = jnp.where(kmask, s, -jnp.inf)

        m_prev = m_ref[h]                                              # (tq, 1)
        m_new = jnp.maximum(m_prev, jnp.max(s, axis=-1, keepdims=True))
        alpha = jnp.exp(m_prev - m_new)
        p = jnp.exp(s - m_new)                                         # (tq, tk) f32

        l_ref[h] = alpha * l_ref[h] + jnp.sum(p, axis=-1, keepdims=True)
        acc_ref[:, sl] = alpha * acc_ref[:, sl] + jnp.dot(
            p.astype(v.dtype), v[:, sl], preferred_element_type=jnp.float32)
        m_ref[h] = m_new

    @pl.when(ki == pl.num_programs(2) - 1)
    def _():
        for h in range(num_heads):
            sl = slice(h * d_k, (h + 1) * d_k)
            l = l_ref[h]
            inv0 = pl.reciprocal(l, approx=True)      # EUP seed
            inv_l = inv0 * (2.0 - l * inv0)           # one Newton step -> ~f32 accurate
            acc_ref[:, sl] = acc_ref[:, sl] * inv_l
        o_ref[0] = acc_ref[...].astype(o_ref.dtype)   # single lane-dense store


def pallas_flash_attention(Qh, Kh, Vh, num_heads, *, tq=512, tk=256, out_dtype=None):
    """Qh: (B, Lq, d_model); Kh, Vh: (B, Lk, d_model). Heads live along the last axis.
    Returns (B, Lq, d_model)."""
    B, Lq, d_model = Qh.shape
    Lk = Kh.shape[1]
    assert d_model % num_heads == 0
    d_k = d_model // num_heads
    out_dtype = Qh.dtype if out_dtype is None else out_dtype

    tq_, Lqp = _plan_dim(Lq, tq, 8)
    tk_, Lkp = _plan_dim(Lk, tk, 8)
    if Lqp != Lq:
        Qh = jnp.pad(Qh, ((0, 0), (0, Lqp - Lq), (0, 0)))
    if Lkp != Lk:
        Kh = jnp.pad(Kh, ((0, 0), (0, Lkp - Lk), (0, 0)))
        Vh = jnp.pad(Vh, ((0, 0), (0, Lkp - Lk), (0, 0)))

    grid = (B, Lqp // tq_, Lkp // tk_)
    kern = functools.partial(_flash_attn_kernel, num_heads=num_heads, d_k=d_k,
                             kv_len=Lk, block_k=tk_, need_k_mask=(Lkp != Lk))

    out = pl.pallas_call(
        kern,
        out_shape=jax.ShapeDtypeStruct((B, Lqp, d_model), out_dtype),
        grid_spec=pltpu.PrefetchScalarGridSpec(
            num_scalar_prefetch=0,
            grid=grid,
            in_specs=[
                pl.BlockSpec((1, tq_, d_model), lambda b, qi, ki: (b, qi, 0)),
                pl.BlockSpec((1, tk_, d_model), lambda b, qi, ki: (b, ki, 0)),
                pl.BlockSpec((1, tk_, d_model), lambda b, qi, ki: (b, ki, 0)),
            ],
            out_specs=pl.BlockSpec((1, tq_, d_model), lambda b, qi, ki: (b, qi, 0)),
            scratch_shapes=[
                pltpu.VMEM((num_heads, tq_, 1), jnp.float32),   # running max m (per head)
                pltpu.VMEM((num_heads, tq_, 1), jnp.float32),   # running denom l (per head)
                pltpu.VMEM((tq_, d_model), jnp.float32),        # running numerator (lane-dense)
            ],
        ),
        compiler_params=pltpu.CompilerParams(
            dimension_semantics=("parallel", "parallel", "arbitrary"),
            vmem_limit_bytes=_vmem_limit()),
    )(Qh, Kh, Vh)

    if Lqp != Lq:
        out = out[:, :Lq, :]
    return out


# ----------------------------------------------------------------------------
# Module forward
# ----------------------------------------------------------------------------

def multi_head_attention(params, q, k, v, num_heads, is_self_attention=None):
    """Forward pass matching the PyTorch module (mask=None, dropout=eval/identity).

    q: (len_q, B, d_model); k, v: (len_k, B, d_model).  Returns (len_q, B, d_model).
    `params` is the packed param dict from pack_params (pre-stacked, pre-scaled,
    pre-cast).  Pass is_self_attention explicitly under jit (identity check on
    tracers never triggers)."""
    if is_self_attention is None:
        is_self_attention = (q is k) and (k is v)

    len_q, B, d_model = q.shape
    len_k = k.shape[0]
    cdt = params["qkv_w"].dtype          # compute dtype fed to the MXU
    out_dtype = q.dtype

    # (L, B, d_model) -> (B, L, d_model): the only wrapper transposes besides the
    # final output one (head split/merge happens inside the kernels, layout-free).
    qT = jnp.transpose(q, (1, 0, 2)).astype(cdt)

    if is_self_attention:
        qkv = pallas_stacked_linear(qT.reshape(B * len_q, d_model),
                                    params["qkv_w"], params["qkv_b"])
        qkv = qkv.reshape(3, B, len_q, d_model)           # free reshape
        Qh, Kh, Vh = qkv[0], qkv[1], qkv[2]
    else:
        kT = jnp.transpose(k, (1, 0, 2)).astype(cdt)
        Qh = pallas_stacked_linear(qT.reshape(B * len_q, d_model),
                                   params["qkv_w"][0:1], params["qkv_b"][0:1]
                                   )[0].reshape(B, len_q, d_model)
        if k is v:
            kv = pallas_stacked_linear(kT.reshape(B * len_k, d_model),
                                       params["qkv_w"][1:3], params["qkv_b"][1:3])
            Kh = kv[0].reshape(B, len_k, d_model)
            Vh = kv[1].reshape(B, len_k, d_model)
        else:
            vT = jnp.transpose(v, (1, 0, 2)).astype(cdt)
            Kh = pallas_stacked_linear(kT.reshape(B * len_k, d_model),
                                       params["qkv_w"][1:2], params["qkv_b"][1:2]
                                       )[0].reshape(B, len_k, d_model)
            Vh = pallas_stacked_linear(vT.reshape(B * len_k, d_model),
                                       params["qkv_w"][2:3], params["qkv_b"][2:3]
                                       )[0].reshape(B, len_k, d_model)

    ctx = pallas_flash_attention(Qh, Kh, Vh, num_heads)          # (B, Lq, d_model)

    out = pallas_stacked_linear(ctx.reshape(B * len_q, d_model),
                                params["wo_w"], params["wo_b"],
                                out_dtype=out_dtype)[0]
    out = out.reshape(B, len_q, d_model)
    return jnp.transpose(out, (1, 0, 2))                          # (len_q, B, d_model)


# ----------------------------------------------------------------------------
# Parameter init (nn.Linear(d_model, d_model), pre-transposed) + one-time packing
# ----------------------------------------------------------------------------

def init_params(key, d_model):
    bound = 1.0 / math.sqrt(d_model)
    names = ["Wq", "Wk", "Wv", "Wo"]
    params = {}
    keys = jax.random.split(key, 2 * len(names))
    for i, name in enumerate(names):
        # stored as (d_in, d_out) so kernels never transpose weights per call
        params[f"{name}_w"] = jax.random.uniform(
            keys[2 * i], (d_model, d_model), jnp.float32, -bound, bound)
        params[f"{name}_b"] = jax.random.uniform(
            keys[2 * i + 1], (d_model,), jnp.float32, -bound, bound)
    return params


def pack_params(raw, num_heads, compute_dtype=jnp.bfloat16):
    """One-time packing: stack Wq/Wk/Wv, fold 1/sqrt(d_k) into Wq, cast for the MXU."""
    d_model = raw["Wq_w"].shape[0]
    assert d_model % num_heads == 0
    inv_scale = 1.0 / math.sqrt(d_model // num_heads)
    qkv_w = jnp.stack([raw["Wq_w"] * inv_scale, raw["Wk_w"], raw["Wv_w"]]
                      ).astype(compute_dtype)
    qkv_b = jnp.stack([raw["Wq_b"] * inv_scale, raw["Wk_b"], raw["Wv_b"]]
                      ).astype(jnp.float32)
    return {"qkv_w": qkv_w, "qkv_b": qkv_b,
            "wo_w": raw["Wo_w"][None].astype(compute_dtype),
            "wo_b": raw["Wo_b"][None].astype(jnp.float32)}


# ----------------------------------------------------------------------------
# Pure-JAX reference (for correctness check)
# ----------------------------------------------------------------------------

def reference_mha(params, q, k, v, num_heads):
    len_q, B, d_model = q.shape
    len_k = k.shape[0]
    d_k = d_model // num_heads
    scale = math.sqrt(d_k)
    lin = lambda x, w, b: x @ w + b            # weights already (d_in, d_out)
    Q = lin(q, params["Wq_w"], params["Wq_b"]).reshape(len_q, B, num_heads, d_k).transpose(1, 2, 0, 3)
    K = lin(k, params["Wk_w"], params["Wk_b"]).reshape(len_k, B, num_heads, d_k).transpose(1, 2, 0, 3)
    V = lin(v, params["Wv_w"], params["Wv_b"]).reshape(len_k, B, num_heads, d_k).transpose(1, 2, 0, 3)
    scores = jnp.einsum("bhqd,bhkd->bhqk", Q, K) / scale
    attn = jax.nn.softmax(scores, axis=-1)
    ctx = jnp.einsum("bhqk,bhkd->bhqd", attn, V)
    ctx = ctx.transpose(2, 0, 1, 3).reshape(len_q, B, d_model)
    return lin(ctx, params["Wo_w"], params["Wo_b"])


if __name__ == "__main__":
    d_model = 32
    num_heads = 4
    seq = 8
    batch = 2

    key = jax.random.PRNGKey(0)
    kx, kk, kv_, kp = jax.random.split(key, 4)
    x = jax.random.normal(kx, (seq, batch, d_model), jnp.float32)
    k_in = jax.random.normal(kk, (seq, batch, d_model), jnp.float32)
    v_in = jax.random.normal(kv_, (seq, batch, d_model), jnp.float32)
    raw = init_params(kp, d_model)

    # 1) Self-attention, bf16 MXU feed (production config) -> loosened tolerance.
    params_bf16 = pack_params(raw, num_heads, jnp.bfloat16)
    out_self = jax.block_until_ready(
        multi_head_attention(params_bf16, x, x, x, num_heads, is_self_attention=True))
    ref_self = reference_mha(raw, x, x, x, num_heads)
    assert out_self.shape == (seq, batch, d_model)
    err = float(jnp.max(jnp.abs(out_self - ref_self)))
    assert err < 7.5e-2, f"self-attn (bf16) max abs err {err}"

    # 2) Cross-attention, f32 path (separate projections) -> tight tolerance.
    params_f32 = pack_params(raw, num_heads, jnp.float32)
    out_cross = jax.block_until_ready(
        multi_head_attention(params_f32, x, k_in, v_in, num_heads, is_self_attention=False))
    ref_cross = reference_mha(raw, x, k_in, v_in, num_heads)
    assert jnp.allclose(out_cross, ref_cross, atol=1e-3, rtol=1e-3), "cross-attn mismatch"

    print("KERNEL_OK")
</pallas_src>

<mosaic_0001>
module attributes {stable_mosaic.version = 11 : i64} {
  func.func @_stacked_linear_kernel(%arg0: i32, %arg1: i32, %arg2: i32, %arg3: i32, %arg4: memref<16x32xbf16, #tpu.memory_space<vmem>>, %arg5: memref<1x32x32xbf16, #tpu.memory_space<vmem>>, %arg6: memref<1x1x32xf32, #tpu.memory_space<vmem>>, %arg7: memref<1x16x32xbf16, #tpu.memory_space<vmem>>, %arg8: memref<16x32xf32, #tpu.memory_space<vmem>>) attributes {dimension_semantics = [#tpu.dimension_semantics<parallel>, #tpu.dimension_semantics<parallel>, #tpu.dimension_semantics<parallel>, #tpu.dimension_semantics<arbitrary>], iteration_bounds = array<i64: 1, 3, 1, 1>, scalar_prefetch = 0 : i64, scratch_operands = 1 : i64, tpu.core_type = #tpu.core_type<tc>, window_params = [{transform_indices = @transform_0, window_bounds = array<i64: 16, 32>}, {transform_indices = @transform_1, window_bounds = array<i64: 1, 32, 32>}, {transform_indices = @transform_2, window_bounds = array<i64: 1, 1, 32>}, {transform_indices = @transform_3, window_bounds = array<i64: 1, 16, 32>}]} {
    %c0 = arith.constant 0 : index
    %c0_0 = arith.constant 0 : index
    %0 = vector.load %arg4[%c0, %c0_0] : memref<16x32xbf16, #tpu.memory_space<vmem>>, vector<16x32xbf16>
    %c0_1 = arith.constant 0 : index
    %c0_2 = arith.constant 0 : index
    %c0_3 = arith.constant 0 : index
    %1 = vector.load %arg5[%c0_1, %c0_2, %c0_3] : memref<1x32x32xbf16, #tpu.memory_space<vmem>>, vector<1x32x32xbf16>
    %2 = vector.shape_cast %1 : vector<1x32x32xbf16> to vector<32x32xbf16>
    %cst = arith.constant dense<0.000000e+00> : vector<16x32xf32>
    %3 = tpu.matmul %0, %2, %cst {dimension_numbers = #tpu.dot_dimension_numbers<[1], [0], [0], [1], [0, 0, 1, 1], [], []>} : vector<16x32xbf16>, vector<32x32xbf16>, vector<16x32xf32> -> vector<16x32xf32>
    %c0_4 = arith.constant 0 : index
    %c0_5 = arith.constant 0 : index
    %c0_6 = arith.constant 0 : index
    %4 = vector.load %arg6[%c0_4, %c0_5, %c0_6] : memref<1x1x32xf32, #tpu.memory_space<vmem>>, vector<1x1x32xf32>
    %5 = vector.shape_cast %4 : vector<1x1x32xf32> to vector<1x32xf32>
    %6 = vector.broadcast %5 : vector<1x32xf32> to vector<16x32xf32>
    %7 = arith.addf %3, %6 : vector<16x32xf32>
    %8 = arith.truncf %7 : vector<16x32xf32> to vector<16x32xbf16>
    %c0_7 = arith.constant 0 : index
    %c0_8 = arith.constant 0 : index
    %c0_9 = arith.constant 0 : index
    %9 = vector.load %arg7[%c0_7, %c0_8, %c0_9] : memref<1x16x32xbf16, #tpu.memory_space<vmem>>, vector<1x16x32xbf16>
    %10 = vector.shape_cast %9 : vector<1x16x32xbf16> to vector<16x32xbf16>
    %11 = vector.shape_cast %8 : vector<16x32xbf16> to vector<1x16x32xbf16>
    tpu.vector_store %arg7[%c0_7, %c0_8, %c0_9], %11 {strides = array<i32>} : memref<1x16x32xbf16, #tpu.memory_space<vmem>>, vector<1x16x32xbf16>,
    return
  }
  func.func @transform_0(%arg0: i32, %arg1: i32, %arg2: i32, %arg3: i32) -> (i32, i32) {
    %c0_i32 = arith.constant 0 : i32
    return %arg0, %arg3 : i32, i32
  }
  func.func @transform_1(%arg0: i32, %arg1: i32, %arg2: i32, %arg3: i32) -> (i32, i32, i32) {
    %c0_i32 = arith.constant 0 : i32
    return %arg1, %arg3, %arg2 : i32, i32, i32
  }
  func.func @transform_2(%arg0: i32, %arg1: i32, %arg2: i32, %arg3: i32) -> (i32, i32, i32) {
    %c0_i32 = arith.constant 0 : i32
    %c0_i32_0 = arith.constant 0 : i32
    return %arg1, %c0_i32, %arg2 : i32, i32, i32
  }
  func.func @transform_3(%arg0: i32, %arg1: i32, %arg2: i32, %arg3: i32) -> (i32, i32, i32) {
    %c0_i32 = arith.constant 0 : i32
    return %arg1, %arg0, %arg2 : i32, i32, i32
  }
}

</mosaic_0001>

<llo_original>
// kernel: tpu_custom_call.1
$region0: #{tpu_custom_call.1}
  #allocation0 [shape = 'u32[]', space=smem, size = 0x4, offset = 0x4, fixed_abs, tag = 'smem constant byte address 0x4 - core index']
  #allocation1 [shape = 'u32[72,128]{1,0:T(1,128)}', space=vmem, size = 0x9000, scoped, tag = 'internal scratch']
  #allocation2 [shape = 'f32[16,32]{1,0:T(8,128)}', space=vmem, size = 0x2000, scoped, tag = 'scratch operand']
  %s0 = inlined_call_operand.hbm [shape: bf16[16,32], index: 0, kind: input, shape index: {}]
  %s1 = inlined_call_operand.hbm [shape: bf16[3,32,32], index: 1, kind: input, shape index: {}]
  %s2 = inlined_call_operand.hbm [shape: f32[3,1,32], index: 2, kind: input, shape index: {}]
  %s3 = inlined_call_operand.hbm [shape: bf16[3,16,32], index: 3, kind: output, shape index: {}]
  %s4 = sld [smem:[#allocation0]]
  $region57: #{tpu_custom_call.1} parent=0
    _
  %s6 = ssub.s32 1, %s4
  %s7 = scalar_select 0, %s6, %s4
  $region1: #{tpu_custom_call.1} parent=0
    #allocation3 [shape = 'u8[4096]{0}', space=vmem, size = 0x1000, scoped, tag = 'input window, operand 0, single buffered']
    #allocation4 [shape = 's32[2]{0}', space=sflag, size = 0x8, scoped, tag = 'scoped memory for tpu_custom_call.1']
    #allocation5 [shape = 's32[2]{0}', space=sflag, size = 0x8, scoped, tag = 'scoped memory for tpu_custom_call.1']
    #allocation6 [shape = 'u8[16384]{0}', space=vmem, size = 0x4000, scoped, tag = 'input window, operand 1']
    #allocation7 [shape = 's32[2]{0}', space=sflag, size = 0x8, scoped, tag = 'scoped memory for tpu_custom_call.1']
    #allocation8 [shape = 'u8[1024]{0}', space=vmem, size = 0x400, scoped, tag = 'input window, operand 2']
    #allocation9 [shape = 'u8[8192]{0}', space=vmem, size = 0x2000, scoped, tag = 'output window, operand 0']
    %8 = vsyncpa [#allocation4], 0
    %9 = vsyncpa [#allocation7], 0
    %s10 = scalar_lea.sflag [#allocation7], 1
    %11 = vsyncpa %s10, 0
    %12 = vsyncpa [#allocation5], 0
    %s13 = scalar_lea.sflag [#allocation5], 1
    %14 = vsyncpa %s13, 0
    loop: start=0, step=1, limit=5
    $region2: #{tpu_custom_call.1} parent=1 // loop_pre_header
      _
    $region3: #{tpu_custom_call.1} parent=1 // loop_header
      %s16 = sphi 0, %s20
      %p17 = scmp.ge.s32.totalorder %s16, 5
      %s23 = sphi 0, %s49
      %s24 = sphi 0, %s45
      %s25 = sphi 0, %s41
      %s26 = sphi 0, %s37
      %s27 = sphi 0, %s23
      %s28 = sphi 0, %s24
      %s29 = sphi 0, %s25
      %s30 = sphi 0, %s26
      %s31 = sphi 0, %s27
      %s32 = sphi 0, %s28
      %s33 = sphi 0, %s29
      %s34 = sphi 0, %s30
      %s54 = sphi 0, %s56
      %s57 = sphi 0, %s54
      %s58 = sphi 0, %s57
      %s74 = sphi 0, %s58
      %s84 = sphi 0, %s86
      %s87 = sphi 0, %s84
      %s88 = sphi 0, %s87
      %s104 = sphi 0, %s88
      %s112 = sphi 0, %s114
      %s115 = sphi 0, %s112
      %s116 = sphi 0, %s115
      %s132 = sphi 0, %s116
      %s142 = sphi 0, %s144
      %s145 = sphi 0, %s142
      %s146 = sphi 0, %s145
      %s162 = sphi 0, %s146
    $region4: #{tpu_custom_call.1} parent=1 // loop_header_branch
      %19 = sbr.rel (%p17) target = $region8
    $region5: #{tpu_custom_call.1} parent=1 // loop_body
      %s21 = ssub.s32 %s16, 1
      %s22 = ssub.s32 %s16, 2
      %s35 = sadd.s32 1, %s26
      %p36 = scmp.ge.s32.totalorder %s35, 1
      %s37 = scalar_select %p36, 0, %s35
      %s38 = sadd.s32 1, %s25
      %s39 = scalar_select %p36, %s38, %s25
      %p40 = scmp.ge.s32.totalorder %s39, 1
      %s41 = scalar_select %p40, 0, %s39
      %s42 = sadd.s32 1, %s24
      %s43 = scalar_select %p40, %s42, %s24
      %p44 = scmp.ge.s32.totalorder %s43, 3
      %s45 = scalar_select %p44, 0, %s43
      %s46 = sadd.s32 1, %s23
      %s47 = scalar_select %p44, %s46, %s23
      %p48 = scmp.ge.s32.totalorder %s47, 1
      %s49 = scalar_select %p48, 0, %s47
      %s50 = ssub.s32 %s23, %s49
      %s51 = ssub.s32 %s26, %s37
      %s52 = sor.u32 %s50, %s51
      %p53 = scmp.eq.s32.totalorder %s52, 0
      %s55 = sadd.s32 %s54, 1
      %s56 = scalar_select %p53, %s54, %s55
      %p59 = pneg %p53
      %p60 = scmp.eq.s32.totalorder %s16, 2
      %p61 = por %p59, %p60
      %p62 = scmp.ne.s32.totalorder %s54, %s57
      %p63 = scmp.eq.s32.totalorder %s16, 0
      %p64 = por %p62, %p63
      %p65 = scmp.ne.s32.totalorder %s54, %s57
      %p66 = scmp.eq.s32.totalorder %s21, 2
      %p67 = por %p65, %p66
      %p68 = scmp.ne.s32.totalorder %s57, %s58
      %p69 = scmp.eq.s32.totalorder %s21, 0
      %p70 = por %p68, %p69
      %p71 = scmp.ne.s32.totalorder %s57, %s58
      %p72 = scmp.eq.s32.totalorder %s22, 2
      %p73 = por %p71, %p72
      %p75 = scmp.ne.s32.totalorder %s58, %s74
      %p76 = scmp.eq.s32.totalorder %s22, 0
      %p77 = por %p75, %p76
      %s78 = ssub.s32 %s24, %s45
      %s79 = ssub.s32 %s26, %s37
      %s80 = sor.u32 %s78, %s79
      %s81 = ssub.s32 %s25, %s41
      %s82 = sor.u32 %s80, %s81
      %p83 = scmp.eq.s32.totalorder %s82, 0
      %s85 = sadd.s32 %s84, 1
      %s86 = scalar_select %p83, %s84, %s85
      %p89 = pneg %p83
      %p90 = scmp.eq.s32.totalorder %s16, 2
      %p91 = por %p89, %p90
      %p92 = scmp.ne.s32.totalorder %s84, %s87
      %p93 = scmp.eq.s32.totalorder %s16, 0
      %p94 = por %p92, %p93
      %p95 = scmp.ne.s32.totalorder %s84, %s87
      %p96 = scmp.eq.s32.totalorder %s21, 2
      %p97 = por %p95, %p96
      %p98 = scmp.ne.s32.totalorder %s87, %s88
      %p99 = scmp.eq.s32.totalorder %s21, 0
      %p100 = por %p98, %p99
      %p101 = scmp.ne.s32.totalorder %s87, %s88
      %p102 = scmp.eq.s32.totalorder %s22, 2
      %p103 = por %p101, %p102
      %p105 = scmp.ne.s32.totalorder %s88, %s104
      %p106 = scmp.eq.s32.totalorder %s22, 0
      %p107 = por %p105, %p106
      %s108 = ssub.s32 %s24, %s45
      %s109 = ssub.s32 %s25, %s41
      %s110 = sor.u32 %s108, %s109
      %p111 = scmp.eq.s32.totalorder %s110, 0
      %s113 = sadd.s32 %s112, 1
      %s114 = scalar_select %p111, %s112, %s113
      %p117 = pneg %p111
      %p118 = scmp.eq.s32.totalorder %s16, 2
      %p119 = por %p117, %p118
      %p120 = scmp.ne.s32.totalorder %s112, %s115
      %p121 = scmp.eq.s32.totalorder %s16, 0
      %p122 = por %p120, %p121
      %p123 = scmp.ne.s32.totalorder %s112, %s115
      %p124 = scmp.eq.s32.totalorder %s21, 2
      %p125 = por %p123, %p124
      %p126 = scmp.ne.s32.totalorder %s115, %s116
      %p127 = scmp.eq.s32.totalorder %s21, 0
      %p128 = por %p126, %p127
      %p129 = scmp.ne.s32.totalorder %s115, %s116
      %p130 = scmp.eq.s32.totalorder %s22, 2
      %p131 = por %p129, %p130
      %p133 = scmp.ne.s32.totalorder %s116, %s132
      %p134 = scmp.eq.s32.totalorder %s22, 0
      %p135 = por %p133, %p134
      %s136 = ssub.s32 %s24, %s45
      %s137 = ssub.s32 %s23, %s49
      %s138 = sor.u32 %s136, %s137
      %s139 = ssub.s32 %s25, %s41
      %s140 = sor.u32 %s138, %s139
      %p141 = scmp.eq.s32.totalorder %s140, 0
      %s143 = sadd.s32 %s142, 1
      %s144 = scalar_select %p141, %s142, %s143
      %p147 = pneg %p141
      %p148 = scmp.eq.s32.totalorder %s16, 2
      %p149 = por %p147, %p148
      %p150 = scmp.ne.s32.totalorder %s142, %s145
      %p151 = scmp.eq.s32.totalorder %s16, 0
      %p152 = por %p150, %p151
      %p153 = scmp.ne.s32.totalorder %s142, %s145
      %p154 = scmp.eq.s32.totalorder %s21, 2
      %p155 = por %p153, %p154
      %p156 = scmp.ne.s32.totalorder %s145, %s146
      %p157 = scmp.eq.s32.totalorder %s21, 0
      %p158 = por %p156, %p157
      %p159 = scmp.ne.s32.totalorder %s145, %s146
      %p160 = scmp.eq.s32.totalorder %s22, 2
      %p161 = por %p159, %p160
      %p163 = scmp.ne.s32.totalorder %s146, %s162
      %p164 = scmp.eq.s32.totalorder %s22, 0
      %p165 = por %p163, %p164
      %p166 = scmp.le.s32.totalorder 1, %s16
      %p167 = scmp.lt.s32.totalorder %s16, 4
      %p168 = pnand %p166, %p167
      %p169 = pneg %p168
      // Predicated region
      $region9: #{tpu_custom_call.1} parent=5 // pred_check
        _
      $region10: #{tpu_custom_call.1} parent=5 // pred_check_branch
        %171 = sbr.rel (%p168) target = $region12
      $region11: #{tpu_custom_call.1} parent=5 // pred_region
        %s172 = ssub.s32 %s16, 1
        // Predicated region
        $region13: #{tpu_custom_call.1} parent=11 // pred_check
          %p173 = pneg %p70
        $region14: #{tpu_custom_call.1} parent=11 // pred_check_branch
          %175 = sbr.rel (%p173) target = $region16
        $region15: #{tpu_custom_call.1} parent=11 // pred_region
          %s176 = smul.u32 2, %s27
          %178 = vsyncadd [#allocation4], 0
          %s179 = sadd.s32 %s30, %s176
          %s180 = smul.addr %s179, 4
          %s181 = scalar_lea.hbm %s0, %s180
          %s182 = sshll.u32 %s181, 4
          %s183 = int_to_ptr.hbm [resolvable:$true] %s182
          %s184 = sshll.u32 [#allocation3], 4
          %s185 = int_to_ptr.vmem [resolvable:$true] %s184
          %190 = dma.hbm_to_vmem [thread:$0]  %s183, 128, %s185, [#allocation4], 64, 64, 4
        $region16: #{tpu_custom_call.1} parent=11 // pred_fallthru
          _
      $region12: #{tpu_custom_call.1} parent=5 // pred_fallthru
        _
      %p191 = scmp.lt.s32.totalorder %s16, 3
      // Predicated region
      $region17: #{tpu_custom_call.1} parent=5 // pred_check
        %p192 = pneg %p191
      $region18: #{tpu_custom_call.1} parent=5 // pred_check_branch
        %194 = sbr.rel (%p192) target = $region20
      $region19: #{tpu_custom_call.1} parent=5 // pred_region
        // Predicated region
        $region21: #{tpu_custom_call.1} parent=19 // pred_check
          %p195 = pneg %p94
        $region22: #{tpu_custom_call.1} parent=19 // pred_check_branch
          %197 = sbr.rel (%p195) target = $region24
        $region23: #{tpu_custom_call.1} parent=19 // pred_region
          %s198 = sand.u32 %s16, 1
          %s199 = scalar_lea.sflag [#allocation7], %s198
          %s200 = sand.u32 %s84, 1
          %s201 = smul.addr %s200, 16
          %s202 = scalar_lea.vmem [#allocation6], %s201
          %s203 = smul.u32 4, %s26
          %205 = vsyncadd %s199, 0
          %s206 = sadd.s32 %s25, %s203
          %s207 = smul.addr %s24, 4
          %s208 = sadd.s32 %s206, %s207
          %s209 = smul.addr %s208, 4
          %s210 = scalar_lea.hbm %s1, %s209
          %s211 = sshll.u32 %s210, 4
          %s212 = int_to_ptr.hbm [resolvable:$true] %s211
          %s213 = sshll.u32 %s202, 4
          %s214 = int_to_ptr.vmem [resolvable:$true] %s213
          %219 = dma.hbm_to_vmem [thread:$0]  %s212, 256, %s214, %s199, 64, 64, 4
        $region24: #{tpu_custom_call.1} parent=19 // pred_fallthru
          _
        // Predicated region
        $region25: #{tpu_custom_call.1} parent=19 // pred_check
          %p220 = pneg %p122
        $region26: #{tpu_custom_call.1} parent=19 // pred_check_branch
          %222 = sbr.rel (%p220) target = $region28
        $region27: #{tpu_custom_call.1} parent=19 // pred_region
          %s223 = sand.u32 %s16, 1
          %s224 = scalar_lea.sflag [#allocation7], %s223
          %s225 = sand.u32 %s112, 1
          %s226 = scalar_lea.vmem [#allocation8], %s225
          %228 = vsyncadd %s224, 0
          %s229 = sadd.s32 %s25, %s24
          %s230 = scalar_lea.hbm %s2, %s229
          %s232 = sshll.u32 %s230, 4
          %s233 = int_to_ptr.hbm [resolvable:$true] %s232
          %s234 = sshll.u32 %s226, 4
          %s235 = int_to_ptr.vmem [resolvable:$true] %s234
          %237 = dma.hbm_to_vmem [thread:$0]  %s233, 16, %s235, %s224
        $region28: #{tpu_custom_call.1} parent=19 // pred_fallthru
          _
      $region20: #{tpu_custom_call.1} parent=5 // pred_fallthru
        _
      %p238 = scmp.le.s32.totalorder 1, %s16
      %p239 = scmp.lt.s32.totalorder %s16, 4
      %p240 = pnand %p238, %p239
      %p241 = pneg %p240
      // Predicated region
      $region29: #{tpu_custom_call.1} parent=5 // pred_check
        _
      $region30: #{tpu_custom_call.1} parent=5 // pred_check_branch
        %243 = sbr.rel (%p240) target = $region32
      $region31: #{tpu_custom_call.1} parent=5 // pred_region
        %s244 = ssub.s32 %s16, 1
        // Predicated region
        $region33: #{tpu_custom_call.1} parent=31 // pred_check
          %p245 = pneg %p70
        $region34: #{tpu_custom_call.1} parent=31 // pred_check_branch
          %247 = sbr.rel (%p245) target = $region36
        $region35: #{tpu_custom_call.1} parent=31 // pred_region
          %249 = dma.done [#allocation4], 128
        $region36: #{tpu_custom_call.1} parent=31 // pred_fallthru
          _
        %s250 = sand.u32 %s21, 1
        %s251 = scalar_lea.sflag [#allocation7], %s250
        %s252 = sand.u32 %s87, 1
        %s253 = smul.addr %s252, 16
        %s254 = scalar_lea.vmem [#allocation6], %s253
        // Predicated region
        $region37: #{tpu_custom_call.1} parent=31 // pred_check
          %p255 = pneg %p100
        $region38: #{tpu_custom_call.1} parent=31 // pred_check_branch
          %257 = sbr.rel (%p255) target = $region40
        $region39: #{tpu_custom_call.1} parent=31 // pred_region
          %259 = dma.done %s251, 256
        $region40: #{tpu_custom_call.1} parent=31 // pred_fallthru
          _
        %s260 = sand.u32 %s21, 1
        %s261 = scalar_lea.sflag [#allocation7], %s260
        %s262 = sand.u32 %s115, 1
        %s263 = scalar_lea.vmem [#allocation8], %s262
        // Predicated region
        $region41: #{tpu_custom_call.1} parent=31 // pred_check
          %p264 = pneg %p128
        $region42: #{tpu_custom_call.1} parent=31 // pred_check_branch
          %266 = sbr.rel (%p264) target = $region44
        $region43: #{tpu_custom_call.1} parent=31 // pred_region
          %268 = dma.done %s261, 16
        $region44: #{tpu_custom_call.1} parent=31 // pred_fallthru
          _
        %p269 = pneg %p70
        %p270 = pneg %p67
        %s271 = sand.u32 %s21, 1
        %s272 = scalar_lea.sflag [#allocation7], %s271
        %s273 = sand.u32 %s87, 1
        %s274 = smul.addr %s273, 16
        %s275 = scalar_lea.vmem [#allocation6], %s274
        %p276 = pneg %p100
        %p277 = pneg %p97
        %s278 = sand.u32 %s21, 1
        %s279 = scalar_lea.sflag [#allocation7], %s278
        %s280 = sand.u32 %s115, 1
        %s281 = scalar_lea.vmem [#allocation8], %s280
        %p282 = pneg %p128
        %p283 = pneg %p125
        %p284 = pneg %p158
        %p285 = pneg %p155
        %s286 = sand.u32 %s145, 1
        %s287 = scalar_lea.sflag [#allocation5], %s286
        %s288 = sand.u32 %s145, 1
        %s289 = smul.addr %s288, 8
        %s290 = scalar_lea.vmem [#allocation9], %s289
        %s291 = smul.u32 2, %s27
        %s292 = smul.u32 4, %s30
        %s293 = smul.u32 2, %s27
        %v295 = vld [vmem:[#allocation3] sm:$0xf]
        %v296 = vld [vmem:[#allocation3 + $0x4] sm:$0xf]
        %v297 = vld [vmem:[%s254] sm:$0xf]
        %v298 = vld [vmem:[%s254 + $0x4] sm:$0xf]
        %v299 = vld [vmem:[%s254 + $0x8] sm:$0xf]
        %v300 = vld [vmem:[%s254 + $0xc] sm:$0xf]
        %v301 = vld [vmem:[%s263] sm:$0x1]
        %v303 = vperm.slane %v301, 0
        %v307 = vunpack.c.l.b16 %v295
        %v308 = vunpack.c.l.b16 %v296
        %v309 = vpack.c.b16 %v308, %v307
        %v314 = vunpack.c.l.b16 %v297
        %v315 = vunpack.c.l.b16 %v298
        %v316 = vunpack.c.l.b16 %v299
        %v317 = vunpack.c.l.b16 %v300
        %v318 = vpack.c.b16 %v315, %v314
        %v319 = vpack.c.b16 %v317, %v316
        %vm322 = vcmask 261120
        %v324 = vsel %vm322, %v309, 0
        %326 = vmatpush.bf16.msra.mxu0 0
        %327 = vmatpush.bf16.msra.mxu0 0
        %328 = vmatpush.bf16.msra.mxu0 0
        %329 = vmatpush.bf16.msra.mxu0 0
        %330 = vmatpush.bf16.msra.mxu0 0
        %331 = vmatpush.bf16.msra.mxu0 0
        %332 = vmatpush.bf16.msra.mxu0 %v319
        %333 = vmatpush.bf16.msra.mxu0 %v318
        %334 = vmatmul.bf16.gmra.mxu0 %v324
        %v335 = vpop.f32.mrf.mxu0
        %v336 = vadd.f32 %v303, %v335
        %v337 = vpop.f32.mrf.mxu0
        %v338 = vadd.f32 %v303, %v337
        %339 = vdwg.mxu0
        %v340 = vpack.c.bf16 %v336, %v336
        %v341 = vpack.c.bf16 %v338, %v338
        %vm342 = vcmask 257024
        %343 = vst.msk [vmem:[%s290] sm:$0xf] %vm342, %v340
        %344 = vst.msk [vmem:[%s290 + $0x4] sm:$0xf] %vm342, %v341
        %s345 = sand.u32 %s145, 1
        %s346 = scalar_lea.sflag [#allocation5], %s345
        %s347 = sand.u32 %s145, 1
        %s348 = smul.addr %s347, 8
        %s349 = scalar_lea.vmem [#allocation9], %s348
        // Predicated region
        $region45: #{tpu_custom_call.1} parent=31 // pred_check
          %p350 = pneg %p155
        $region46: #{tpu_custom_call.1} parent=31 // pred_check_branch
          %352 = sbr.rel (%p350) target = $region48
        $region47: #{tpu_custom_call.1} parent=31 // pred_region
          %s353 = smul.u32 2, %s27
          %355 = vsyncadd %s346, 0
          %s356 = sadd.s32 %s29, %s353
          %s357 = smul.addr %s28, 2
          %s358 = sadd.s32 %s356, %s357
          %s359 = smul.addr %s358, 4
          %s360 = scalar_lea.hbm %s3, %s359
          %s361 = sshll.u32 %s349, 4
          %s362 = int_to_ptr.vmem [resolvable:$true] %s361
          %s363 = sshll.u32 %s360, 4
          %s364 = int_to_ptr.hbm [resolvable:$true] %s363
          %369 = dma.vmem_to_hbm [thread:$0]  %s362, 128, %s364, %s346, 64, 64, 4
        $region48: #{tpu_custom_call.1} parent=31 // pred_fallthru
          _
      $region32: #{tpu_custom_call.1} parent=5 // pred_fallthru
        _
      %p370 = scmp.le.s32.totalorder 2, %s16
      // Predicated region
      $region49: #{tpu_custom_call.1} parent=5 // pred_check
        %p371 = pneg %p370
      $region50: #{tpu_custom_call.1} parent=5 // pred_check_branch
        %373 = sbr.rel (%p371) target = $region52
      $region51: #{tpu_custom_call.1} parent=5 // pred_region
        %s374 = ssub.s32 %s16, 2
        // Predicated region
        $region53: #{tpu_custom_call.1} parent=51 // pred_check
          %p375 = pneg %p161
        $region54: #{tpu_custom_call.1} parent=51 // pred_check_branch
          %377 = sbr.rel (%p375) target = $region56
        $region55: #{tpu_custom_call.1} parent=51 // pred_region
          %s378 = sand.u32 %s146, 1
          %s379 = scalar_lea.sflag [#allocation5], %s378
          %s380 = sand.u32 %s146, 1
          %s381 = smul.addr %s380, 8
          %s382 = scalar_lea.vmem [#allocation9], %s381
          %384 = dma.done %s379, 128
        $region56: #{tpu_custom_call.1} parent=51 // pred_fallthru
          _
      $region52: #{tpu_custom_call.1} parent=5 // pred_fallthru
        _
    $region6: #{tpu_custom_call.1} parent=1 // loop_footer
      %s20 = sadd.s32 1, %s16
    $region7: #{tpu_custom_call.1} parent=1 // loop_footer_branch
      %15 = sbr.rel target = $region3
    $region8: #{tpu_custom_call.1} parent=1 // loop_exit
      _
    %385 = vsyncpa [#allocation4], 1
    %s386 = scalar_lea.sflag [#allocation4], 1
    %387 = vsyncpa %s386, 1
    %388 = vsyncpa [#allocation7], 1
    %s389 = scalar_lea.sflag [#allocation7], 1
    %390 = vsyncpa %s389, 1
    %391 = vsyncpa [#allocation5], 1
    %s392 = scalar_lea.sflag [#allocation5], 1
    %393 = vsyncpa %s392, 1

</llo_original>
